<compile_context>
chip_gen: v7x
topology: tpu7x:2x2x1
jax: 0.10.0
libtpu: 0.0.40
codegen_flags: <defaults>
</compile_context>

<pallas_src>
import jax
import jax.numpy as jnp
from jax.experimental import pallas as pl
from jax.experimental.pallas import tpu as pltpu


def _gcn_kernel(x_ref, adj_ref, w_ref, b_ref, o_ref, agg_scr):
    # x_ref  : (b_tile, V, c_in)    f32  node features
    # adj_ref: (b_tile, V, V)       bf16 adjacency (0/1 entries -> exact in bf16)
    # w_ref  : (V, c_in, V*c_out)   f32  w_ref[v] = W.T placed at lanes [v*c_out, (v+1)*c_out)
    # b_ref  : (1, V*c_out)         f32  bias tiled once per node block
    # o_ref  : (b_tile, V*c_out)    f32  lane-dense output slab
    # agg_scr: (b_tile, V, c_in)    f32  VMEM scratch for the normalized aggregate
    _, V, _ = x_ref.shape

    adj = adj_ref[...]                                  # bf16
    x_bf = x_ref[...].astype(jnp.bfloat16)              # only rounding source (~4e-3 rel)

    # Neighborhood aggregation in the (cheap) c_in space, native bf16 MXU path,
    # f32 accumulation.  (Batched per-slice matmuls; MXU has huge slack here.)
    agg = jnp.einsum("bvu,bui->bvi", adj, x_bf,
                     preferred_element_type=jnp.float32)          # (b_tile, V, c_in)

    # Degree normalization.  deg is a small exact integer; reciprocal kept exact.
    deg = jnp.sum(adj.astype(jnp.float32), axis=-1, keepdims=True)  # (b_tile, V, 1)
    agg_scr[...] = agg * pl.reciprocal(deg, approx=False)

    # Block-diagonal projection: lanes [v*c_out, (v+1)*c_out) of the output row get
    # agg[:, v, :] @ W.T.  Each lane-placed weight slab w_ref[v] makes the MXU emit
    # the full V*c_out-lane row directly; summing the V partial results is a few
    # VPU adds (idle slot).  No reshape / relayout anywhere.
    out = jnp.dot(agg_scr[:, 0, :], w_ref[0], preferred_element_type=jnp.float32)
    for v in range(1, V):
        out = out + jnp.dot(agg_scr[:, v, :], w_ref[v],
                            preferred_element_type=jnp.float32)

    # Bias added AFTER the division: adj @ bias == deg * bias, so this ordering is
    # mathematically identical to the PyTorch module.
    o_ref[...] = (out + b_ref[...]).astype(o_ref.dtype)


def _pick_b_tile(B):
    # Sized by VMEM, not MXU rows (review).  Per (n,t) slice the padded VMEM
    # footprint is ~ x 4 KiB + adj 4 KiB (each double-buffered) + out 0.5 KiB (x2)
    # + scratch 4 KiB ~= 21 KiB, so b_tile = 512 is ~10.5 MiB -> comfortably under
    # the 32 MiB scoped limit on every generation (incl. v7x's 64 MiB VMEM).
    MAX_B_TILE = 512
    return min(B, MAX_B_TILE)


def gcn_layer(node_feats, adj_matrix, weight, bias, *, b_tile=None):
    """node_feats: [N, T, V, c_in], adj_matrix: [N, T, V, V]
    weight: [c_out, c_in] (nn.Linear convention), bias: [c_out]"""
    N, T, V, c_in = node_feats.shape
    c_out = weight.shape[0]
    B = N * T

    if b_tile is None:
        b_tile = _pick_b_tile(B)
    grid = pl.cdiv(B, b_tile)    # ragged tail (if any) is masked by Pallas, no pad

    x = node_feats.reshape(B, V, c_in)                        # free reshape, f32 in HBM
    adj = adj_matrix.reshape(B, V, V).astype(jnp.bfloat16)    # 0/1 -> exact bf16

    # Block-diagonal projection weight kron(I_V, W.T), split per node block so the
    # kernel can index w[v] -> (c_in, V*c_out) with W.T sitting at lane block v.
    w_kron3 = jnp.kron(jnp.eye(V, dtype=weight.dtype), weight.T).reshape(V, c_in, V * c_out)
    bias_flat = jnp.tile(bias, V).reshape(1, V * c_out)

    out_flat = pl.pallas_call(
        _gcn_kernel,
        out_shape=jax.ShapeDtypeStruct((B, V * c_out), node_feats.dtype),
        grid_spec=pltpu.PrefetchScalarGridSpec(
            num_scalar_prefetch=0,
            grid=(grid,),
            in_specs=[
                pl.BlockSpec((b_tile, V, c_in), lambda i: (i, 0, 0)),
                pl.BlockSpec((b_tile, V, V), lambda i: (i, 0, 0)),
                # Constant index_maps -> not re-DMAed across grid steps.
                pl.BlockSpec((V, c_in, V * c_out), lambda i: (0, 0, 0)),
                pl.BlockSpec((1, V * c_out), lambda i: (0, 0)),
            ],
            out_specs=pl.BlockSpec((b_tile, V * c_out), lambda i: (i, 0)),
            scratch_shapes=[pltpu.VMEM((b_tile, V, c_in), jnp.float32)],
        ),
        compiler_params=pltpu.CompilerParams(
            dimension_semantics=("parallel",),
            vmem_limit_bytes=32 * 1024 * 1024,   # v5e default is only 16 MiB
        ),
    )(x, adj, w_kron3, bias_flat)

    return out_flat.reshape(N, T, V, c_out)


if __name__ == "__main__":
    N, T, V, c_in, c_out = 2, 3, 8, 4, 16

    key = jax.random.PRNGKey(0)
    k_x, k_adj, k_w, k_b = jax.random.split(key, 4)

    node_feats = jax.random.normal(k_x, (N, T, V, c_in), dtype=jnp.float32)

    # Random directed adjacency with identity connections added (deg >= 1).
    rand_adj = (jax.random.uniform(k_adj, (N, T, V, V)) < 0.3).astype(jnp.float32)
    eye = jnp.eye(V, dtype=jnp.float32)
    adj_matrix = jnp.clip(rand_adj + eye[None, None], 0.0, 1.0)

    # Deterministic nn.Linear-style init: U(-1/sqrt(c_in), 1/sqrt(c_in)).
    bound = 1.0 / jnp.sqrt(jnp.float32(c_in))
    weight = jax.random.uniform(k_w, (c_out, c_in), minval=-bound, maxval=bound,
                                dtype=jnp.float32)
    bias = jax.random.uniform(k_b, (c_out,), minval=-bound, maxval=bound,
                              dtype=jnp.float32)

    out = gcn_layer(node_feats, adj_matrix, weight, bias)
    out = jax.block_until_ready(out)

    # Pure-JAX f32 reference in the original PyTorch order.  Tolerance covers the
    # in-kernel bf16 cast of node_feats for the native-MXU aggregation (~4e-3 rel).
    h_ref = node_feats @ weight.T + bias
    agg_ref = jnp.einsum("ntij,ntjc->ntic", adj_matrix, h_ref)
    deg_ref = adj_matrix.sum(-1, keepdims=True)
    ref = agg_ref / deg_ref

    assert out.shape == (N, T, V, c_out)
    assert jnp.allclose(out, ref, atol=2e-2, rtol=2e-2), float(jnp.max(jnp.abs(out - ref)))

    print("KERNEL_OK")
</pallas_src>

<mosaic_0001>
module attributes {stable_mosaic.version = 11 : i64} {
  func.func @_gcn_kernel(%arg0: i32, %arg1: memref<6x8x4xf32, #tpu.memory_space<vmem>>, %arg2: memref<6x8x8xbf16, #tpu.memory_space<vmem>>, %arg3: memref<8x4x128xf32, #tpu.memory_space<vmem>>, %arg4: memref<1x128xf32, #tpu.memory_space<vmem>>, %arg5: memref<6x128xf32, #tpu.memory_space<vmem>>, %arg6: memref<6x8x4xf32, #tpu.memory_space<vmem>>) attributes {dimension_semantics = [#tpu.dimension_semantics<parallel>], iteration_bounds = array<i64: 1>, scalar_prefetch = 0 : i64, scratch_operands = 1 : i64, tpu.core_type = #tpu.core_type<tc>, window_params = [{transform_indices = @transform_0, window_bounds = array<i64: 6, 8, 4>}, {transform_indices = @transform_1, window_bounds = array<i64: 6, 8, 8>}, {pipeline_mode = #tpu.pipeline_mode<synchronous>, transform_indices = @transform_2, window_bounds = array<i64: 8, 4, 128>}, {pipeline_mode = #tpu.pipeline_mode<synchronous>, transform_indices = @transform_3, window_bounds = array<i64: 1, 128>}, {transform_indices = @transform_4, window_bounds = array<i64: 6, 128>}]} {
    %c0 = arith.constant 0 : index
    %c0_0 = arith.constant 0 : index
    %c0_1 = arith.constant 0 : index
    %0 = vector.load %arg2[%c0, %c0_0, %c0_1] : memref<6x8x8xbf16, #tpu.memory_space<vmem>>, vector<6x8x8xbf16>
    %c0_2 = arith.constant 0 : index
    %c0_3 = arith.constant 0 : index
    %c0_4 = arith.constant 0 : index
    %1 = vector.load %arg1[%c0_2, %c0_3, %c0_4] : memref<6x8x4xf32, #tpu.memory_space<vmem>>, vector<6x8x4xf32>
    %2 = arith.truncf %1 : vector<6x8x4xf32> to vector<6x8x4xbf16>
    "tpu.trace_start"() <{level = 10 : i32, message = "bvu,bui->bvi"}> : () -> ()
    %cst = arith.constant dense<0.000000e+00> : vector<6x8x4xf32>
    %3 = tpu.matmul %0, %2, %cst {dimension_numbers = #tpu.dot_dimension_numbers<[2], [1], [1], [2], [0, 0, 0, 1, 1, 2], [0], [0]>} : vector<6x8x8xbf16>, vector<6x8x4xbf16>, vector<6x8x4xf32> -> vector<6x8x4xf32>
    "tpu.trace_stop"() : () -> ()
    %4 = arith.extf %0 : vector<6x8x8xbf16> to vector<6x8x8xf32>
    %cst_5 = arith.constant dense<0.000000e+00> : vector<6x8xf32>
    %5 = vector.multi_reduction <add>, %4, %cst_5 [2] : vector<6x8x8xf32> to vector<6x8xf32>
    %6 = vector.shape_cast %5 : vector<6x8xf32> to vector<6x8x1xf32>
    %7 = tpu.reciprocal %6 : vector<6x8x1xf32> -> vector<6x8x1xf32>
    %8 = vector.broadcast %7 : vector<6x8x1xf32> to vector<6x8x4xf32>
    %9 = arith.mulf %3, %8 : vector<6x8x4xf32>
    %c0_6 = arith.constant 0 : index
    %c0_7 = arith.constant 0 : index
    %c0_8 = arith.constant 0 : index
    %10 = vector.load %arg6[%c0_6, %c0_7, %c0_8] : memref<6x8x4xf32, #tpu.memory_space<vmem>>, vector<6x8x4xf32>
    tpu.vector_store %arg6[%c0_6, %c0_7, %c0_8], %9 {strides = array<i32>} : memref<6x8x4xf32, #tpu.memory_space<vmem>>, vector<6x8x4xf32>,
    %c0_9 = arith.constant 0 : index
    %c0_10 = arith.constant 0 : index
    %c0_11 = arith.constant 0 : index
    %11 = vector.load %arg6[%c0_9, %c0_10, %c0_11] : memref<6x8x4xf32, #tpu.memory_space<vmem>>, vector<6x1x4xf32>
    %12 = vector.shape_cast %11 : vector<6x1x4xf32> to vector<6x4xf32>
    %c0_12 = arith.constant 0 : index
    %c0_13 = arith.constant 0 : index
    %c0_14 = arith.constant 0 : index
    %13 = vector.load %arg3[%c0_12, %c0_13, %c0_14] : memref<8x4x128xf32, #tpu.memory_space<vmem>>, vector<1x4x128xf32>
    %14 = vector.shape_cast %13 : vector<1x4x128xf32> to vector<4x128xf32>
    %cst_15 = arith.constant dense<0.000000e+00> : vector<6x128xf32>
    %15 = tpu.matmul %12, %14, %cst_15 {dimension_numbers = #tpu.dot_dimension_numbers<[1], [0], [0], [1], [0, 0, 1, 1], [], []>} : vector<6x4xf32>, vector<4x128xf32>, vector<6x128xf32> -> vector<6x128xf32>
    %c0_16 = arith.constant 0 : index
    %c1 = arith.constant 1 : index
    %c0_17 = arith.constant 0 : index
    %16 = vector.load %arg6[%c0_16, %c1, %c0_17] : memref<6x8x4xf32, #tpu.memory_space<vmem>>, vector<6x1x4xf32>
    %17 = vector.shape_cast %16 : vector<6x1x4xf32> to vector<6x4xf32>
    %c1_18 = arith.constant 1 : index
    %c0_19 = arith.constant 0 : index
    %c0_20 = arith.constant 0 : index
    %18 = vector.load %arg3[%c1_18, %c0_19, %c0_20] : memref<8x4x128xf32, #tpu.memory_space<vmem>>, vector<1x4x128xf32>
    %19 = vector.shape_cast %18 : vector<1x4x128xf32> to vector<4x128xf32>
    %cst_21 = arith.constant dense<0.000000e+00> : vector<6x128xf32>
    %20 = tpu.matmul %17, %19, %cst_21 {dimension_numbers = #tpu.dot_dimension_numbers<[1], [0], [0], [1], [0, 0, 1, 1], [], []>} : vector<6x4xf32>, vector<4x128xf32>, vector<6x128xf32> -> vector<6x128xf32>
    %21 = arith.addf %15, %20 : vector<6x128xf32>
    %c0_22 = arith.constant 0 : index
    %c2 = arith.constant 2 : index
    %c0_23 = arith.constant 0 : index
    %22 = vector.load %arg6[%c0_22, %c2, %c0_23] : memref<6x8x4xf32, #tpu.memory_space<vmem>>, vector<6x1x4xf32>
    %23 = vector.shape_cast %22 : vector<6x1x4xf32> to vector<6x4xf32>
    %c2_24 = arith.constant 2 : index
    %c0_25 = arith.constant 0 : index
    %c0_26 = arith.constant 0 : index
    %24 = vector.load %arg3[%c2_24, %c0_25, %c0_26] : memref<8x4x128xf32, #tpu.memory_space<vmem>>, vector<1x4x128xf32>
    %25 = vector.shape_cast %24 : vector<1x4x128xf32> to vector<4x128xf32>
    %cst_27 = arith.constant dense<0.000000e+00> : vector<6x128xf32>
    %26 = tpu.matmul %23, %25, %cst_27 {dimension_numbers = #tpu.dot_dimension_numbers<[1], [0], [0], [1], [0, 0, 1, 1], [], []>} : vector<6x4xf32>, vector<4x128xf32>, vector<6x128xf32> -> vector<6x128xf32>
    %27 = arith.addf %21, %26 : vector<6x128xf32>
    %c0_28 = arith.constant 0 : index
    %c3 = arith.constant 3 : index
    %c0_29 = arith.constant 0 : index
    %28 = vector.load %arg6[%c0_28, %c3, %c0_29] : memref<6x8x4xf32, #tpu.memory_space<vmem>>, vector<6x1x4xf32>
    %29 = vector.shape_cast %28 : vector<6x1x4xf32> to vector<6x4xf32>
    %c3_30 = arith.constant 3 : index
    %c0_31 = arith.constant 0 : index
    %c0_32 = arith.constant 0 : index
    %30 = vector.load %arg3[%c3_30, %c0_31, %c0_32] : memref<8x4x128xf32, #tpu.memory_space<vmem>>, vector<1x4x128xf32>
    %31 = vector.shape_cast %30 : vector<1x4x128xf32> to vector<4x128xf32>
    %cst_33 = arith.constant dense<0.000000e+00> : vector<6x128xf32>
    %32 = tpu.matmul %29, %31, %cst_33 {dimension_numbers = #tpu.dot_dimension_numbers<[1], [0], [0], [1], [0, 0, 1, 1], [], []>} : vector<6x4xf32>, vector<4x128xf32>, vector<6x128xf32> -> vector<6x128xf32>
    %33 = arith.addf %27, %32 : vector<6x128xf32>
    %c0_34 = arith.constant 0 : index
    %c4 = arith.constant 4 : index
    %c0_35 = arith.constant 0 : index
    %34 = vector.load %arg6[%c0_34, %c4, %c0_35] : memref<6x8x4xf32, #tpu.memory_space<vmem>>, vector<6x1x4xf32>
    %35 = vector.shape_cast %34 : vector<6x1x4xf32> to vector<6x4xf32>
    %c4_36 = arith.constant 4 : index
    %c0_37 = arith.constant 0 : index
    %c0_38 = arith.constant 0 : index
    %36 = vector.load %arg3[%c4_36, %c0_37, %c0_38] : memref<8x4x128xf32, #tpu.memory_space<vmem>>, vector<1x4x128xf32>
    %37 = vector.shape_cast %36 : vector<1x4x128xf32> to vector<4x128xf32>
    %cst_39 = arith.constant dense<0.000000e+00> : vector<6x128xf32>
    %38 = tpu.matmul %35, %37, %cst_39 {dimension_numbers = #tpu.dot_dimension_numbers<[1], [0], [0], [1], [0, 0, 1, 1], [], []>} : vector<6x4xf32>, vector<4x128xf32>, vector<6x128xf32> -> vector<6x128xf32>
    %39 = arith.addf %33, %38 : vector<6x128xf32>
    %c0_40 = arith.constant 0 : index
    %c5 = arith.constant 5 : index
    %c0_41 = arith.constant 0 : index
    %40 = vector.load %arg6[%c0_40, %c5, %c0_41] : memref<6x8x4xf32, #tpu.memory_space<vmem>>, vector<6x1x4xf32>
    %41 = vector.shape_cast %40 : vector<6x1x4xf32> to vector<6x4xf32>
    %c5_42 = arith.constant 5 : index
    %c0_43 = arith.constant 0 : index
    %c0_44 = arith.constant 0 : index
    %42 = vector.load %arg3[%c5_42, %c0_43, %c0_44] : memref<8x4x128xf32, #tpu.memory_space<vmem>>, vector<1x4x128xf32>
    %43 = vector.shape_cast %42 : vector<1x4x128xf32> to vector<4x128xf32>
    %cst_45 = arith.constant dense<0.000000e+00> : vector<6x128xf32>
    %44 = tpu.matmul %41, %43, %cst_45 {dimension_numbers = #tpu.dot_dimension_numbers<[1], [0], [0], [1], [0, 0, 1, 1], [], []>} : vector<6x4xf32>, vector<4x128xf32>, vector<6x128xf32> -> vector<6x128xf32>
    %45 = arith.addf %39, %44 : vector<6x128xf32>
    %c0_46 = arith.constant 0 : index
    %c6 = arith.constant 6 : index
    %c0_47 = arith.constant 0 : index
    %46 = vector.load %arg6[%c0_46, %c6, %c0_47] : memref<6x8x4xf32, #tpu.memory_space<vmem>>, vector<6x1x4xf32>
    %47 = vector.shape_cast %46 : vector<6x1x4xf32> to vector<6x4xf32>
    %c6_48 = arith.constant 6 : index
    %c0_49 = arith.constant 0 : index
    %c0_50 = arith.constant 0 : index
    %48 = vector.load %arg3[%c6_48, %c0_49, %c0_50] : memref<8x4x128xf32, #tpu.memory_space<vmem>>, vector<1x4x128xf32>
    %49 = vector.shape_cast %48 : vector<1x4x128xf32> to vector<4x128xf32>
    %cst_51 = arith.constant dense<0.000000e+00> : vector<6x128xf32>
    %50 = tpu.matmul %47, %49, %cst_51 {dimension_numbers = #tpu.dot_dimension_numbers<[1], [0], [0], [1], [0, 0, 1, 1], [], []>} : vector<6x4xf32>, vector<4x128xf32>, vector<6x128xf32> -> vector<6x128xf32>
    %51 = arith.addf %45, %50 : vector<6x128xf32>
    %c0_52 = arith.constant 0 : index
    %c7 = arith.constant 7 : index
    %c0_53 = arith.constant 0 : index
    %52 = vector.load %arg6[%c0_52, %c7, %c0_53] : memref<6x8x4xf32, #tpu.memory_space<vmem>>, vector<6x1x4xf32>
    %53 = vector.shape_cast %52 : vector<6x1x4xf32> to vector<6x4xf32>
    %c7_54 = arith.constant 7 : index
    %c0_55 = arith.constant 0 : index
    %c0_56 = arith.constant 0 : index
    %54 = vector.load %arg3[%c7_54, %c0_55, %c0_56] : memref<8x4x128xf32, #tpu.memory_space<vmem>>, vector<1x4x128xf32>
    %55 = vector.shape_cast %54 : vector<1x4x128xf32> to vector<4x128xf32>
    %cst_57 = arith.constant dense<0.000000e+00> : vector<6x128xf32>
    %56 = tpu.matmul %53, %55, %cst_57 {dimension_numbers = #tpu.dot_dimension_numbers<[1], [0], [0], [1], [0, 0, 1, 1], [], []>} : vector<6x4xf32>, vector<4x128xf32>, vector<6x128xf32> -> vector<6x128xf32>
    %57 = arith.addf %51, %56 : vector<6x128xf32>
    %c0_58 = arith.constant 0 : index
    %c0_59 = arith.constant 0 : index
    %58 = vector.load %arg4[%c0_58, %c0_59] : memref<1x128xf32, #tpu.memory_space<vmem>>, vector<1x128xf32>
    %59 = vector.broadcast %58 : vector<1x128xf32> to vector<6x128xf32>
    %60 = arith.addf %57, %59 : vector<6x128xf32>
    %c0_60 = arith.constant 0 : index
    %c0_61 = arith.constant 0 : index
    %61 = vector.load %arg5[%c0_60, %c0_61] : memref<6x128xf32, #tpu.memory_space<vmem>>, vector<6x128xf32>
    tpu.vector_store %arg5[%c0_60, %c0_61], %60 {strides = array<i32>} : memref<6x128xf32, #tpu.memory_space<vmem>>, vector<6x128xf32>,
    return
  }
  func.func @transform_0(%arg0: i32) -> (i32, i32, i32) {
    %c0_i32 = arith.constant 0 : i32
    %c0_i32_0 = arith.constant 0 : i32
    %c0_i32_1 = arith.constant 0 : i32
    return %arg0, %c0_i32, %c0_i32_0 : i32, i32, i32
  }
  func.func @transform_1(%arg0: i32) -> (i32, i32, i32) {
    %c0_i32 = arith.constant 0 : i32
    %c0_i32_0 = arith.constant 0 : i32
    %c0_i32_1 = arith.constant 0 : i32
    return %arg0, %c0_i32, %c0_i32_0 : i32, i32, i32
  }
  func.func @transform_2(%arg0: i32) -> (i32, i32, i32) {
    %c0_i32 = arith.constant 0 : i32
    %c0_i32_0 = arith.constant 0 : i32
    %c0_i32_1 = arith.constant 0 : i32
    %c0_i32_2 = arith.constant 0 : i32
    return %c0_i32, %c0_i32_0, %c0_i32_1 : i32, i32, i32
  }
  func.func @transform_3(%arg0: i32) -> (i32, i32) {
    %c0_i32 = arith.constant 0 : i32
    %c0_i32_0 = arith.constant 0 : i32
    %c0_i32_1 = arith.constant 0 : i32
    return %c0_i32, %c0_i32_0 : i32, i32
  }
  func.func @transform_4(%arg0: i32) -> (i32, i32) {
    %c0_i32 = arith.constant 0 : i32
    %c0_i32_0 = arith.constant 0 : i32
    return %arg0, %c0_i32 : i32, i32
  }
}

</mosaic_0001>

<llo_original>
// kernel: tpu_custom_call.1
$region0: #{tpu_custom_call.1}
  #allocation0 [shape = 'u32[]', space=smem, size = 0x4, offset = 0x4, fixed_abs, tag = 'smem constant byte address 0x4 - core index']
  #allocation1 [shape = 'u32[144,128]{1,0:T(1,128)}', space=vmem, size = 0x12000, scoped, tag = 'internal scratch']
  #allocation2 [shape = 'f32[6,8,4]{2,1,0:T(8,128)}', space=vmem, size = 0x6000, scoped, tag = 'scratch operand']
  %s0 = inlined_call_operand.vmem [shape: f32[6,8,4], index: 0, kind: input, shape index: {}]
  %s1 = inlined_call_operand.vmem [shape: bf16[6,8,8], index: 1, kind: input, shape index: {}]
  %s2 = inlined_call_operand.vmem [shape: f32[8,4,128], index: 2, kind: input, shape index: {}]
  %s3 = inlined_call_operand.vmem [shape: f32[1,128], index: 3, kind: input, shape index: {}]
  %s4 = inlined_call_operand.hbm [shape: f32[6,128], index: 4, kind: output, shape index: {}]
  %s5 = sld [smem:[#allocation0]]
  $region26: #{tpu_custom_call.1} parent=0
    _
  %s7 = ssub.s32 1, %s5
  %s8 = scalar_select 0, %s7, %s5
  $region1: #{tpu_custom_call.1} parent=0
    #allocation3 [shape = 'u8[4096]{0}', space=vmem, size = 0x1000, scoped, tag = 'output window, operand 0, single buffered']
    #allocation4 [shape = 's32[1]{0}', space=sflag, size = 0x4, scoped, tag = 'scoped memory for tpu_custom_call.1']
    %9 = vsyncpa [#allocation4], 0
    // Predicated region
    $region2: #{tpu_custom_call.1} parent=1 // pred_check
      _
    $region3: #{tpu_custom_call.1} parent=1 // pred_check_branch
      %11 = sbr.rel (0) target = $region5
    $region4: #{tpu_custom_call.1} parent=1 // pred_region
      _
    $region5: #{tpu_custom_call.1} parent=1 // pred_fallthru
      _
    // Predicated region
    $region6: #{tpu_custom_call.1} parent=1 // pred_check
      _
    $region7: #{tpu_custom_call.1} parent=1 // pred_check_branch
      %13 = sbr.rel (0) target = $region9
    $region8: #{tpu_custom_call.1} parent=1 // pred_region
      _
    $region9: #{tpu_custom_call.1} parent=1 // pred_fallthru
      _
    // Predicated region
    $region10: #{tpu_custom_call.1} parent=1 // pred_check
      _
    $region11: #{tpu_custom_call.1} parent=1 // pred_check_branch
      %15 = sbr.rel (0) target = $region13
    $region12: #{tpu_custom_call.1} parent=1 // pred_region
      _
    $region13: #{tpu_custom_call.1} parent=1 // pred_fallthru
      _
    // Predicated region
    $region14: #{tpu_custom_call.1} parent=1 // pred_check
      _
    $region15: #{tpu_custom_call.1} parent=1 // pred_check_branch
      %17 = sbr.rel (0) target = $region17
    $region16: #{tpu_custom_call.1} parent=1 // pred_region
      _
    $region17: #{tpu_custom_call.1} parent=1 // pred_fallthru
      _
    %v19 = vld [vmem:[%s1] sm:$0xf]
    %v20 = vld [vmem:[%s1 + $0x4] sm:$0xf]
    %v21 = vld [vmem:[%s1 + $0x8] sm:$0xf]
    %v22 = vld [vmem:[%s1 + $0xc] sm:$0xf]
    %v23 = vld [vmem:[%s1 + $0x10] sm:$0xf]
    %v24 = vld [vmem:[%s1 + $0x14] sm:$0xf]
    %v25 = vld [vmem:[%s0] sm:$0xff]
    %v26 = vld [vmem:[%s0 + $0x8] sm:$0xff]
    %v27 = vld [vmem:[%s0 + $0x10] sm:$0xff]
    %v28 = vld [vmem:[%s0 + $0x18] sm:$0xff]
    %v29 = vld [vmem:[%s0 + $0x20] sm:$0xff]
    %v30 = vld [vmem:[%s0 + $0x28] sm:$0xff]
    %v31 = vpack.c.bf16 %v25, %v25
    %v32 = vpack.c.bf16 %v26, %v26
    %v33 = vpack.c.bf16 %v27, %v27
    %v34 = vpack.c.bf16 %v28, %v28
    %v35 = vpack.c.bf16 %v29, %v29
    %v36 = vpack.c.bf16 %v30, %v30
    %vm37 = vcmask 64512
    %v39 = vsel %vm37, %v19, 0
    %vm41 = vcmask 1043456
    %v43 = vsel %vm41, %v31, 0
    %45 = vmatprep.subr.bf16.mxu0 0
    %46 = vmatpush1.bf16.msra.mxu0 %v43
    %47 = vmatprep.subr.bf16.mxu0 0
    %48 = vmatpush1.bf16.msra.mxu0 0
    %49 = vmatprep.subr.bf16.mxu0 0
    %50 = vmatpush1.bf16.msra.mxu0 0
    %51 = vmatprep.subr.bf16.mxu0 0
    %52 = vmatpush1.bf16.msra.mxu0 0
    %53 = vmatprep.subr.bf16.mxu0 0
    %54 = vmatpush1.bf16.msra.mxu0 0
    %55 = vmatprep.subr.bf16.mxu0 0
    %56 = vmatpush1.bf16.msra.mxu0 0
    %57 = vmatprep.subr.bf16.mxu0 0
    %58 = vmatpush1.bf16.msra.mxu0 0
    %59 = vmatprep.subr.bf16.mxu0 0
    %60 = vmatpush1.bf16.msra.mxu0 0
    %61 = vmatprep.subr.bf16.mxu0 0
    %62 = vmatpush1.bf16.msra.mxu0 0
    %63 = vmatprep.subr.bf16.mxu0 0
    %64 = vmatpush1.bf16.msra.mxu0 0
    %65 = vmatprep.subr.bf16.mxu0 0
    %66 = vmatpush1.bf16.msra.mxu0 0
    %67 = vmatprep.subr.bf16.mxu0 0
    %68 = vmatpush1.bf16.msra.mxu0 0
    %69 = vmatprep.subr.bf16.mxu0 0
    %70 = vmatpush1.bf16.msra.mxu0 0
    %71 = vmatprep.subr.bf16.mxu0 0
    %72 = vmatpush1.bf16.msra.mxu0 0
    %73 = vmatprep.subr.bf16.mxu0 0
    %74 = vmatpush1.bf16.msra.mxu0 0
    %75 = vmatprep.subr.bf16.mxu0 0
    %76 = vmatpush1.bf16.msra.mxu0 0
    %77 = vmatprep.mubr.bf16.mxu0 0
    %78 = vmatmul.mubr.bf16.gmra.mrb[0].mxu0 %v39
    %v79 = vpop.f32.mrb[0].mxu0
    %v80 = vadd.f32 0.0, %v79
    %v81 = vpop.f32.mrb[0].mxu0
    %v82 = vpop.f32.mrb[0].mxu0
    %v83 = vpop.f32.mrb[0].mxu0
    %84 = vdwg.mxu0
    %v86 = vsel %vm37, %v20, 0
    %v89 = vsel %vm41, %v32, 0
    %91 = vmatprep.subr.bf16.mxu0 0
    %92 = vmatpush1.bf16.msra.mxu0 %v89
    %93 = vmatprep.subr.bf16.mxu0 0
    %94 = vmatpush1.bf16.msra.mxu0 0
    %95 = vmatprep.subr.bf16.mxu0 0
    %96 = vmatpush1.bf16.msra.mxu0 0
    %97 = vmatprep.subr.bf16.mxu0 0
    %98 = vmatpush1.bf16.msra.mxu0 0
    %99 = vmatprep.subr.bf16.mxu0 0
    %100 = vmatpush1.bf16.msra.mxu0 0
    %101 = vmatprep.subr.bf16.mxu0 0
    %102 = vmatpush1.bf16.msra.mxu0 0
    %103 = vmatprep.subr.bf16.mxu0 0
    %104 = vmatpush1.bf16.msra.mxu0 0
    %105 = vmatprep.subr.bf16.mxu0 0
    %106 = vmatpush1.bf16.msra.mxu0 0
    %107 = vmatprep.subr.bf16.mxu0 0
    %108 = vmatpush1.bf16.msra.mxu0 0
    %109 = vmatprep.subr.bf16.mxu0 0
    %110 = vmatpush1.bf16.msra.mxu0 0
    %111 = vmatprep.subr.bf16.mxu0 0
    %112 = vmatpush1.bf16.msra.mxu0 0
    %113 = vmatprep.subr.bf16.mxu0 0
    %114 = vmatpush1.bf16.msra.mxu0 0
    %115 = vmatprep.subr.bf16.mxu0 0
    %116 = vmatpush1.bf16.msra.mxu0 0
    %117 = vmatprep.subr.bf16.mxu0 0
    %118 = vmatpush1.bf16.msra.mxu0 0
    %119 = vmatprep.subr.bf16.mxu0 0
    %120 = vmatpush1.bf16.msra.mxu0 0
    %121 = vmatprep.subr.bf16.mxu0 0
    %122 = vmatpush1.bf16.msra.mxu0 0
    %123 = vmatprep.mubr.bf16.mxu0 0
    %124 = vmatmul.mubr.bf16.gmra.mrb[0].mxu0 %v86
    %v125 = vpop.f32.mrb[0].mxu0
    %v126 = vadd.f32 0.0, %v125
    %v127 = vpop.f32.mrb[0].mxu0
    %v128 = vpop.f32.mrb[0].mxu0
    %v129 = vpop.f32.mrb[0].mxu0
    %130 = vdwg.mxu0
    %v132 = vsel %vm37, %v21, 0
    %v135 = vsel %vm41, %v33, 0
    %137 = vmatprep.subr.bf16.mxu0 0
    %138 = vmatpush1.bf16.msra.mxu0 %v135
    %139 = vmatprep.subr.bf16.mxu0 0
    %140 = vmatpush1.bf16.msra.mxu0 0
    %141 = vmatprep.subr.bf16.mxu0 0
    %142 = vmatpush1.bf16.msra.mxu0 0
    %143 = vmatprep.subr.bf16.mxu0 0
    %144 = vmatpush1.bf16.msra.mxu0 0
    %145 = vmatprep.subr.bf16.mxu0 0
    %146 = vmatpush1.bf16.msra.mxu0 0
    %147 = vmatprep.subr.bf16.mxu0 0
    %148 = vmatpush1.bf16.msra.mxu0 0
    %149 = vmatprep.subr.bf16.mxu0 0
    %150 = vmatpush1.bf16.msra.mxu0 0
    %151 = vmatprep.subr.bf16.mxu0 0
    %152 = vmatpush1.bf16.msra.mxu0 0
    %153 = vmatprep.subr.bf16.mxu0 0
    %154 = vmatpush1.bf16.msra.mxu0 0
    %155 = vmatprep.subr.bf16.mxu0 0
    %156 = vmatpush1.bf16.msra.mxu0 0
    %157 = vmatprep.subr.bf16.mxu0 0
    %158 = vmatpush1.bf16.msra.mxu0 0
    %159 = vmatprep.subr.bf16.mxu0 0
    %160 = vmatpush1.bf16.msra.mxu0 0
    %161 = vmatprep.subr.bf16.mxu0 0
    %162 = vmatpush1.bf16.msra.mxu0 0
    %163 = vmatprep.subr.bf16.mxu0 0
    %164 = vmatpush1.bf16.msra.mxu0 0
    %165 = vmatprep.subr.bf16.mxu0 0
    %166 = vmatpush1.bf16.msra.mxu0 0
    %167 = vmatprep.subr.bf16.mxu0 0
    %168 = vmatpush1.bf16.msra.mxu0 0
    %169 = vmatprep.mubr.bf16.mxu0 0
    %170 = vmatmul.mubr.bf16.gmra.mrb[0].mxu0 %v132
    %v171 = vpop.f32.mrb[0].mxu0
    %v172 = vadd.f32 0.0, %v171
    %v173 = vpop.f32.mrb[0].mxu0
    %v174 = vpop.f32.mrb[0].mxu0
    %v175 = vpop.f32.mrb[0].mxu0
    %176 = vdwg.mxu0
    %v178 = vsel %vm37, %v22, 0
    %v181 = vsel %vm41, %v34, 0
    %183 = vmatprep.subr.bf16.mxu0 0
    %184 = vmatpush1.bf16.msra.mxu0 %v181
    %185 = vmatprep.subr.bf16.mxu0 0
    %186 = vmatpush1.bf16.msra.mxu0 0
    %187 = vmatprep.subr.bf16.mxu0 0
    %188 = vmatpush1.bf16.msra.mxu0 0
    %189 = vmatprep.subr.bf16.mxu0 0
    %190 = vmatpush1.bf16.msra.mxu0 0
    %191 = vmatprep.subr.bf16.mxu0 0
    %192 = vmatpush1.bf16.msra.mxu0 0
    %193 = vmatprep.subr.bf16.mxu0 0
    %194 = vmatpush1.bf16.msra.mxu0 0
    %195 = vmatprep.subr.bf16.mxu0 0
    %196 = vmatpush1.bf16.msra.mxu0 0
    %197 = vmatprep.subr.bf16.mxu0 0
    %198 = vmatpush1.bf16.msra.mxu0 0
    %199 = vmatprep.subr.bf16.mxu0 0
    %200 = vmatpush1.bf16.msra.mxu0 0
    %201 = vmatprep.subr.bf16.mxu0 0
    %202 = vmatpush1.bf16.msra.mxu0 0
    %203 = vmatprep.subr.bf16.mxu0 0
    %204 = vmatpush1.bf16.msra.mxu0 0
    %205 = vmatprep.subr.bf16.mxu0 0
    %206 = vmatpush1.bf16.msra.mxu0 0
    %207 = vmatprep.subr.bf16.mxu0 0
    %208 = vmatpush1.bf16.msra.mxu0 0
    %209 = vmatprep.subr.bf16.mxu0 0
    %210 = vmatpush1.bf16.msra.mxu0 0
    %211 = vmatprep.subr.bf16.mxu0 0
    %212 = vmatpush1.bf16.msra.mxu0 0
    %213 = vmatprep.subr.bf16.mxu0 0
    %214 = vmatpush1.bf16.msra.mxu0 0
    %215 = vmatprep.mubr.bf16.mxu0 0
    %216 = vmatmul.mubr.bf16.gmra.mrb[0].mxu0 %v178
    %v217 = vpop.f32.mrb[0].mxu0
    %v218 = vadd.f32 0.0, %v217
    %v219 = vpop.f32.mrb[0].mxu0
    %v220 = vpop.f32.mrb[0].mxu0
    %v221 = vpop.f32.mrb[0].mxu0
    %222 = vdwg.mxu0
    %v224 = vsel %vm37, %v23, 0
    %v227 = vsel %vm41, %v35, 0
    %229 = vmatprep.subr.bf16.mxu0 0
    %230 = vmatpush1.bf16.msra.mxu0 %v227
    %231 = vmatprep.subr.bf16.mxu0 0
    %232 = vmatpush1.bf16.msra.mxu0 0
    %233 = vmatprep.subr.bf16.mxu0 0
    %234 = vmatpush1.bf16.msra.mxu0 0
    %235 = vmatprep.subr.bf16.mxu0 0
    %236 = vmatpush1.bf16.msra.mxu0 0
    %237 = vmatprep.subr.bf16.mxu0 0
    %238 = vmatpush1.bf16.msra.mxu0 0
    %239 = vmatprep.subr.bf16.mxu0 0
    %240 = vmatpush1.bf16.msra.mxu0 0
    %241 = vmatprep.subr.bf16.mxu0 0
    %242 = vmatpush1.bf16.msra.mxu0 0
    %243 = vmatprep.subr.bf16.mxu0 0
    %244 = vmatpush1.bf16.msra.mxu0 0
    %245 = vmatprep.subr.bf16.mxu0 0
    %246 = vmatpush1.bf16.msra.mxu0 0
    %247 = vmatprep.subr.bf16.mxu0 0
    %248 = vmatpush1.bf16.msra.mxu0 0
    %249 = vmatprep.subr.bf16.mxu0 0
    %250 = vmatpush1.bf16.msra.mxu0 0
    %251 = vmatprep.subr.bf16.mxu0 0
    %252 = vmatpush1.bf16.msra.mxu0 0
    %253 = vmatprep.subr.bf16.mxu0 0
    %254 = vmatpush1.bf16.msra.mxu0 0
    %255 = vmatprep.subr.bf16.mxu0 0
    %256 = vmatpush1.bf16.msra.mxu0 0
    %257 = vmatprep.subr.bf16.mxu0 0
    %258 = vmatpush1.bf16.msra.mxu0 0
    %259 = vmatprep.subr.bf16.mxu0 0
    %260 = vmatpush1.bf16.msra.mxu0 0
    %261 = vmatprep.mubr.bf16.mxu0 0
    %262 = vmatmul.mubr.bf16.gmra.mrb[0].mxu0 %v224
    %v263 = vpop.f32.mrb[0].mxu0
    %v264 = vadd.f32 0.0, %v263
    %v265 = vpop.f32.mrb[0].mxu0
    %v266 = vpop.f32.mrb[0].mxu0
    %v267 = vpop.f32.mrb[0].mxu0
    %268 = vdwg.mxu0
    %v270 = vsel %vm37, %v24, 0
    %v273 = vsel %vm41, %v36, 0
    %275 = vmatprep.subr.bf16.mxu0 0
    %276 = vmatpush1.bf16.msra.mxu0 %v273
    %277 = vmatprep.subr.bf16.mxu0 0
    %278 = vmatpush1.bf16.msra.mxu0 0
    %279 = vmatprep.subr.bf16.mxu0 0
    %280 = vmatpush1.bf16.msra.mxu0 0
    %281 = vmatprep.subr.bf16.mxu0 0
    %282 = vmatpush1.bf16.msra.mxu0 0
    %283 = vmatprep.subr.bf16.mxu0 0
    %284 = vmatpush1.bf16.msra.mxu0 0
    %285 = vmatprep.subr.bf16.mxu0 0
    %286 = vmatpush1.bf16.msra.mxu0 0
    %287 = vmatprep.subr.bf16.mxu0 0
    %288 = vmatpush1.bf16.msra.mxu0 0
    %289 = vmatprep.subr.bf16.mxu0 0
    %290 = vmatpush1.bf16.msra.mxu0 0
    %291 = vmatprep.subr.bf16.mxu0 0
    %292 = vmatpush1.bf16.msra.mxu0 0
    %293 = vmatprep.subr.bf16.mxu0 0
    %294 = vmatpush1.bf16.msra.mxu0 0
    %295 = vmatprep.subr.bf16.mxu0 0
    %296 = vmatpush1.bf16.msra.mxu0 0
    %297 = vmatprep.subr.bf16.mxu0 0
    %298 = vmatpush1.bf16.msra.mxu0 0
    %299 = vmatprep.subr.bf16.mxu0 0
    %300 = vmatpush1.bf16.msra.mxu0 0
    %301 = vmatprep.subr.bf16.mxu0 0
    %302 = vmatpush1.bf16.msra.mxu0 0
    %303 = vmatprep.subr.bf16.mxu0 0
    %304 = vmatpush1.bf16.msra.mxu0 0
    %305 = vmatprep.subr.bf16.mxu0 0
    %306 = vmatpush1.bf16.msra.mxu0 0
    %307 = vmatprep.mubr.bf16.mxu0 0
    %308 = vmatmul.mubr.bf16.gmra.mrb[0].mxu0 %v270
    %v309 = vpop.f32.mrb[0].mxu0
    %v310 = vadd.f32 0.0, %v309
    %v311 = vpop.f32.mrb[0].mxu0
    %v312 = vpop.f32.mrb[0].mxu0
    %v313 = vpop.f32.mrb[0].mxu0
    %314 = vdwg.mxu0
    %v315 = vunpack.c.l.bf16 %v19
    %v316 = vunpack.c.l.bf16 %v20
    %v317 = vunpack.c.l.bf16 %v21
    %v318 = vunpack.c.l.bf16 %v22
    %v319 = vunpack.c.l.bf16 %v23
    %v320 = vunpack.c.l.bf16 %v24
    %v321 = vsel %vm37, %v315, 0.0
    %322 = vadd.xlane.f32.xlu0 %v321
    %v323 = vpop.xlane.xlu0 %322
    %v324 = vsel %vm37, %v316, 0.0
    %325 = vadd.xlane.f32.xlu0 %v324
    %v326 = vpop.xlane.xlu0 %325
    %v327 = vsel %vm37, %v317, 0.0
    %328 = vadd.xlane.f32.xlu0 %v327
    %v329 = vpop.xlane.xlu0 %328
    %v330 = vsel %vm37, %v318, 0.0
    %331 = vadd.xlane.f32.xlu0 %v330
    %v332 = vpop.xlane.xlu0 %331
    %v333 = vsel %vm37, %v319, 0.0
    %334 = vadd.xlane.f32.xlu0 %v333
    %v335 = vpop.xlane.xlu0 %334
    %v336 = vsel %vm37, %v320, 0.0
    %337 = vadd.xlane.f32.xlu0 %v336
    %v338 = vpop.xlane.xlu0 %337
    %v339 = vrcp.pop %v323
    %v340 = vrcp.pop %v326
    %v341 = vrcp.pop %v329
    %v342 = vrcp.pop %v332
    %v343 = vrcp.pop %v335
    %v344 = vrcp.pop %v338
    %v345 = vmul.f32 %v80, %v339
    %v346 = vmul.f32 %v126, %v340
    %v347 = vmul.f32 %v172, %v341
    %v348 = vmul.f32 %v218, %v342
    %v349 = vmul.f32 %v264, %v343
    %v350 = vmul.f32 %v310, %v344
    %vm351 = vcmask 31744
    %352 = vst.msk [vmem:[#allocation2] sm:$0xff] %vm351, %v345
    %353 = vst.msk [vmem:[#allocation2 + $0x8] sm:$0xff] %vm351, %v346
    %354 = vst.msk [vmem:[#allocation2 + $0x10] sm:$0xff] %vm351, %v347
    %355 = vst.msk [vmem:[#allocation2 + $0x18] sm:$0xff] %vm351, %v348
    %356 = vst.msk [vmem:[#allocation2 + $0x20] sm:$0xff] %vm351, %v349
    %357 = vst.msk [vmem:[#allocation2 + $0x28] sm:$0xff] %vm351, %v350
    %v358 = vld [vmem:[#allocation2] sm:$0x1]
    %v359 = vld [vmem:[#allocation2 + $0x8] sm:$0x1]
    %v360 = vld [vmem:[#allocation2 + $0x10] sm:$0x1]
    %v361 = vld [vmem:[#allocation2 + $0x18] sm:$0x1]
    %v362 = vld [vmem:[#allocation2 + $0x20] sm:$0x1]
    %v363 = vld [vmem:[#allocation2 + $0x28] sm:$0x1]
    %v364 = vld [vmem:[%s2] sm:$0xf]
    %v365 = vld [vmem:[#allocation2 + $0x1] sm:$0x1]
    %v366 = vld [vmem:[#allocation2 + $0x9] sm:$0x1]
    %v367 = vld [vmem:[#allocation2 + $0x11] sm:$0x1]
    %v368 = vld [vmem:[#allocation2 + $0x19] sm:$0x1]
    %v369 = vld [vmem:[#allocation2 + $0x21] sm:$0x1]
    %v370 = vld [vmem:[#allocation2 + $0x29] sm:$0x1]
    %s371 = scalar_lea.vmem %s2, 4
    %v372 = vld [vmem:[%s371] sm:$0xf]
    %v379 = vrot.slane %v366, 7
    %vm380 = vcmask 1041409
    %v381 = vsel %vm380, %v379, %v365
    %v382 = vrot.slane %v367, 6
    %vm383 = vcmask 1042434
    %v384 = vsel %vm383, %v382, %v381
    %v385 = vrot.slane %v368, 5
    %vm386 = vcmask 1043459
    %v387 = vsel %vm386, %v385, %v384
    %v388 = vrot.slane %v369, 4
    %vm389 = vcmask 1044484
    %v390 = vsel %vm389, %v388, %v387
    %v391 = vrot.slane %v370, 3
    %vm392 = vcmask 1045509
    %v393 = vsel %vm392, %v391, %v390
    %v394 = vsel %vm351, %v393, 0
    %v397 = vsel %vm41, %v372, 0
    %399 = vmatprep.subr.mxu0 0.0
    %400 = vmatpush1.msra.mxu0 %v397
    %401 = vmatprep.subr.mxu0 0.0
    %402 = vmatpush1.msra.mxu0 0.0
    %403 = vmatprep.subr.mxu0 0.0
    %404 = vmatpush1.msra.mxu0 0.0
    %405 = vmatprep.subr.mxu0 0.0
    %406 = vmatpush1.msra.mxu0 0.0
    %407 = vmatprep.subr.mxu0 0.0
    %408 = vmatpush1.msra.mxu0 0.0
    %409 = vmatprep.subr.mxu0 0.0
    %410 = vmatpush1.msra.mxu0 0.0
    %411 = vmatprep.subr.mxu0 0.0
    %412 = vmatpush1.msra.mxu0 0.0
    %413 = vmatprep.subr.mxu0 0.0
    %414 = vmatpush1.msra.mxu0 0.0
    %415 = vmatprep.subr.mxu0 0.0
    %416 = vmatpush1.msra.mxu0 0.0
    %417 = vmatprep.subr.mxu0 0.0
    %418 = vmatpush1.msra.mxu0 0.0
    %419 = vmatprep.subr.mxu0 0.0
    %420 = vmatpush1.msra.mxu0 0.0
    %421 = vmatprep.subr.mxu0 0.0
    %422 = vmatpush1.msra.mxu0 0.0
    %423 = vmatprep.subr.mxu0 0.0
    %424 = vmatpush1.msra.mxu0 0.0
    %425 = vmatprep.subr.mxu0 0.0
    %426 = vmatpush1.msra.mxu0 0.0
    %427 = vmatprep.subr.mxu0 0.0
    %428 = vmatpush1.msra.mxu0 0.0
    %429 = vmatprep.subr.mxu0 0.0
    %430 = vmatpush1.msra.mxu0 0.0
    %431 = vmatprep.subr.mxu0 0.0
    %432 = vmatpush1.msra.mxu0 0.0
    %433 = vmatprep.subr.mxu0 0.0
    %434 = vmatpush1.msra.mxu0 0.0
    %435 = vmatprep.subr.mxu0 0.0
    %436 = vmatpush1.msra.mxu0 0.0
    %437 = vmatprep.subr.mxu0 0.0
    %438 = vmatpush1.msra.mxu0 0.0
    %439 = vmatprep.subr.mxu0 0.0
    %440 = vmatpush1.msra.mxu0 0.0
    %441 = vmatprep.subr.mxu0 0.0
    %442 = vmatpush1.msra.mxu0 0.0
    %443 = vmatprep.subr.mxu0 0.0
    %444 = vmatpush1.msra.mxu0 0.0
    %445 = vmatprep.subr.mxu0 0.0
    %446 = vmatpush1.msra.mxu0 0.0
    %447 = vmatprep.subr.mxu0 0.0
    %448 = vmatpush1.msra.mxu0 0.0
    %449 = vmatprep.subr.mxu0 0.0
    %450 = vmatpush1.msra.mxu0 0.0
    %451 = vmatprep.subr.mxu0 0.0
    %452 = vmatpush1.msra.mxu0 0.0
    %453 = vmatprep.subr.mxu0 0.0
    %454 = vmatpush1.msra.mxu0 0.0
    %455 = vmatprep.subr.mxu0 0.0
    %456 = vmatpush1.msra.mxu0 0.0
    %457 = vmatprep.subr.mxu0 0.0
    %458 = vmatpush1.msra.mxu0 0.0
    %459 = vmatprep.subr.mxu0 0.0
    %460 = vmatpush1.msra.mxu0 0.0
    %461 = vmatprep.subr.mxu0 0.0
    %462 = vmatpush1.msra.mxu0 0.0
    %463 = vmatprep.mubr.f32.mxu0 0.0
    %464 = vmatmul.mubr.f32.gmra.mrb[0].mxu0 %v394
    %v465 = vpop.f32.mrb[0].mxu0
    %v466 = vadd.f32 0.0, %v465
    %v467 = vpop.f32.mrb[0].mxu0
    %468 = vdwg.mxu0
    %v475 = vrot.slane %v359, 7
    %v476 = vsel %vm380, %v475, %v358
    %v477 = vrot.slane %v360, 6
    %v478 = vsel %vm383, %v477, %v476
    %v479 = vrot.slane %v361, 5
    %v480 = vsel %vm386, %v479, %v478
    %v481 = vrot.slane %v362, 4
    %v482 = vsel %vm389, %v481, %v480
    %v483 = vrot.slane %v363, 3
    %v484 = vsel %vm392, %v483, %v482
    %v485 = vsel %vm351, %v484, 0
    %v488 = vsel %vm41, %v364, 0
    %490 = vmatprep.subr.mxu0 0.0
    %491 = vmatpush1.msra.mxu0 %v488
    %492 = vmatprep.subr.mxu0 0.0
    %493 = vmatpush1.msra.mxu0 0.0
    %494 = vmatprep.subr.mxu0 0.0
    %495 = vmatpush1.msra.mxu0 0.0
    %496 = vmatprep.subr.mxu0 0.0
    %497 = vmatpush1.msra.mxu0 0.0
    %498 = vmatprep.subr.mxu0 0.0
    %499 = vmatpush1.msra.mxu0 0.0
    %500 = vmatprep.subr.mxu0 0.0
    %501 = vmatpush1.msra.mxu0 0.0
    %502 = vmatprep.subr.mxu0 0.0
    %503 = vmatpush1.msra.mxu0 0.0
    %504 = vmatprep.subr.mxu0 0.0
    %505 = vmatpush1.msra.mxu0 0.0
    %506 = vmatprep.subr.mxu0 0.0
    %507 = vmatpush1.msra.mxu0 0.0
    %508 = vmatprep.subr.mxu0 0.0
    %509 = vmatpush1.msra.mxu0 0.0
    %510 = vmatprep.subr.mxu0 0.0
    %511 = vmatpush1.msra.mxu0 0.0
    %512 = vmatprep.subr.mxu0 0.0
    %513 = vmatpush1.msra.mxu0 0.0
    %514 = vmatprep.subr.mxu0 0.0
    %515 = vmatpush1.msra.mxu0 0.0
    %516 = vmatprep.subr.mxu0 0.0
    %517 = vmatpush1.msra.mxu0 0.0
    %518 = vmatprep.subr.mxu0 0.0
    %519 = vmatpush1.msra.mxu0 0.0
    %520 = vmatprep.subr.mxu0 0.0
    %521 = vmatpush1.msra.mxu0 0.0
    %522 = vmatprep.subr.mxu0 0.0
    %523 = vmatpush1.msra.mxu0 0.0
    %524 = vmatprep.subr.mxu0 0.0
    %525 = vmatpush1.msra.mxu0 0.0
    %526 = vmatprep.subr.mxu0 0.0
    %527 = vmatpush1.msra.mxu0 0.0
    %528 = vmatprep.subr.mxu0 0.0
    %529 = vmatpush1.msra.mxu0 0.0
    %530 = vmatprep.subr.mxu0 0.0
    %531 = vmatpush1.msra.mxu0 0.0
    %532 = vmatprep.subr.mxu0 0.0
    %533 = vmatpush1.msra.mxu0 0.0
    %534 = vmatprep.subr.mxu0 0.0
    %535 = vmatpush1.msra.mxu0 0.0
    %536 = vmatprep.subr.mxu0 0.0
    %537 = vmatpush1.msra.mxu0 0.0
    %538 = vmatprep.subr.mxu0 0.0
    %539 = vmatpush1.msra.mxu0 0.0
    %540 = vmatprep.subr.mxu0 0.0
    %541 = vmatpush1.msra.mxu0 0.0
    %542 = vmatprep.subr.mxu0 0.0
    %543 = vmatpush1.msra.mxu0 0.0
    %544 = vmatprep.subr.mxu0 0.0
    %545 = vmatpush1.msra.mxu0 0.0
    %546 = vmatprep.subr.mxu0 0.0
    %547 = vmatpush1.msra.mxu0 0.0
    %548 = vmatprep.subr.mxu0 0.0
    %549 = vmatpush1.msra.mxu0 0.0
    %550 = vmatprep.subr.mxu0 0.0
    %551 = vmatpush1.msra.mxu0 0.0
    %552 = vmatprep.subr.mxu0 0.0
    %553 = vmatpush1.msra.mxu0 0.0
    %554 = vmatprep.mubr.f32.mxu0 0.0
    %555 = vmatmul.mubr.f32.gmra.mrb[0].mxu0 %v485
    %v556 = vpop.f32.mrb[0].mxu0
    %v557 = vadd.f32 %v466, %v556
    %v558 = vpop.f32.mrb[0].mxu0
    %559 = vdwg.mxu0
    %v560 = vld [vmem:[#allocation2 + $0x2] sm:$0x1]
    %v561 = vld [vmem:[#allocation2 + $0xa] sm:$0x1]
    %v562 = vld [vmem:[#allocation2 + $0x12] sm:$0x1]
    %v563 = vld [vmem:[#allocation2 + $0x1a] sm:$0x1]
    %v564 = vld [vmem:[#allocation2 + $0x22] sm:$0x1]
    %v565 = vld [vmem:[#allocation2 + $0x2a] sm:$0x1]
    %s566 = scalar_lea.vmem %s2, 8
    %v567 = vld [vmem:[%s566] sm:$0xf]
    %v574 = vrot.slane %v561, 7
    %v575 = vsel %vm380, %v574, %v560
    %v576 = vrot.slane %v562, 6
    %v577 = vsel %vm383, %v576, %v575
    %v578 = vrot.slane %v563, 5
    %v579 = vsel %vm386, %v578, %v577
    %v580 = vrot.slane %v564, 4
    %v581 = vsel %vm389, %v580, %v579
    %v582 = vrot.slane %v565, 3
    %v583 = vsel %vm392, %v582, %v581
    %v584 = vsel %vm351, %v583, 0
    %v587 = vsel %vm41, %v567, 0
    %589 = vmatprep.subr.mxu0 0.0
    %590 = vmatpush1.msra.mxu0 %v587
    %591 = vmatprep.subr.mxu0 0.0
    %592 = vmatpush1.msra.mxu0 0.0
    %593 = vmatprep.subr.mxu0 0.0
    %594 = vmatpush1.msra.mxu0 0.0
    %595 = vmatprep.subr.mxu0 0.0
    %596 = vmatpush1.msra.mxu0 0.0
    %597 = vmatprep.subr.mxu0 0.0
    %598 = vmatpush1.msra.mxu0 0.0
    %599 = vmatprep.subr.mxu0 0.0
    %600 = vmatpush1.msra.mxu0 0.0
    %601 = vmatprep.subr.mxu0 0.0
    %602 = vmatpush1.msra.mxu0 0.0
    %603 = vmatprep.subr.mxu0 0.0
    %604 = vmatpush1.msra.mxu0 0.0
    %605 = vmatprep.subr.mxu0 0.0
    %606 = vmatpush1.msra.mxu0 0.0
    %607 = vmatprep.subr.mxu0 0.0
    %608 = vmatpush1.msra.mxu0 0.0
    %609 = vmatprep.subr.mxu0 0.0
    %610 = vmatpush1.msra.mxu0 0.0
    %611 = vmatprep.subr.mxu0 0.0
    %612 = vmatpush1.msra.mxu0 0.0
    %613 = vmatprep.subr.mxu0 0.0
    %614 = vmatpush1.msra.mxu0 0.0
    %615 = vmatprep.subr.mxu0 0.0
    %616 = vmatpush1.msra.mxu0 0.0
    %617 = vmatprep.subr.mxu0 0.0
    %618 = vmatpush1.msra.mxu0 0.0
    %619 = vmatprep.subr.mxu0 0.0
    %620 = vmatpush1.msra.mxu0 0.0
    %621 = vmatprep.subr.mxu0 0.0
    %622 = vmatpush1.msra.mxu0 0.0
    %623 = vmatprep.subr.mxu0 0.0
    %624 = vmatpush1.msra.mxu0 0.0
    %625 = vmatprep.subr.mxu0 0.0
    %626 = vmatpush1.msra.mxu0 0.0
    %627 = vmatprep.subr.mxu0 0.0
    %628 = vmatpush1.msra.mxu0 0.0
    %629 = vmatprep.subr.mxu0 0.0
    %630 = vmatpush1.msra.mxu0 0.0
    %631 = vmatprep.subr.mxu0 0.0
    %632 = vmatpush1.msra.mxu0 0.0
    %633 = vmatprep.subr.mxu0 0.0
    %634 = vmatpush1.msra.mxu0 0.0
    %635 = vmatprep.subr.mxu0 0.0
    %636 = vmatpush1.msra.mxu0 0.0
    %637 = vmatprep.subr.mxu0 0.0
    %638 = vmatpush1.msra.mxu0 0.0
    %639 = vmatprep.subr.mxu0 0.0
    %640 = vmatpush1.msra.mxu0 0.0
    %641 = vmatprep.subr.mxu0 0.0
    %642 = vmatpush1.msra.mxu0 0.0
    %643 = vmatprep.subr.mxu0 0.0
    %644 = vmatpush1.msra.mxu0 0.0
    %645 = vmatprep.subr.mxu0 0.0
    %646 = vmatpush1.msra.mxu0 0.0
    %647 = vmatprep.subr.mxu0 0.0
    %648 = vmatpush1.msra.mxu0 0.0
    %649 = vmatprep.subr.mxu0 0.0
    %650 = vmatpush1.msra.mxu0 0.0
    %651 = vmatprep.subr.mxu0 0.0
    %652 = vmatpush1.msra.mxu0 0.0
    %653 = vmatprep.mubr.f32.mxu0 0.0
    %654 = vmatmul.mubr.f32.gmra.mrb[0].mxu0 %v584
    %v655 = vpop.f32.mrb[0].mxu0
    %v656 = vadd.f32 0.0, %v655
    %v657 = vpop.f32.mrb[0].mxu0
    %658 = vdwg.mxu0
    %v659 = vadd.f32 %v557, %v656
    %v660 = vld [vmem:[#allocation2 + $0x3] sm:$0x1]
    %v661 = vld [vmem:[#allocation2 + $0xb] sm:$0x1]
    %v662 = vld [vmem:[#allocation2 + $0x13] sm:$0x1]
    %v663 = vld [vmem:[#allocation2 + $0x1b] sm:$0x1]
    %v664 = vld [vmem:[#allocation2 + $0x23] sm:$0x1]
    %v665 = vld [vmem:[#allocation2 + $0x2b] sm:$0x1]
    %s666 = scalar_lea.vmem %s2, 12
    %v667 = vld [vmem:[%s666] sm:$0xf]
    %v674 = vrot.slane %v661, 7
    %v675 = vsel %vm380, %v674, %v660
    %v676 = vrot.slane %v662, 6
    %v677 = vsel %vm383, %v676, %v675
    %v678 = vrot.slane %v663, 5
    %v679 = vsel %vm386, %v678, %v677
    %v680 = vrot.slane %v664, 4
    %v681 = vsel %vm389, %v680, %v679
    %v682 = vrot.slane %v665, 3
    %v683 = vsel %vm392, %v682, %v681
    %v684 = vsel %vm351, %v683, 0
    %v687 = vsel %vm41, %v667, 0
    %689 = vmatprep.subr.mxu0 0.0
    %690 = vmatpush1.msra.mxu0 %v687
    %691 = vmatprep.subr.mxu0 0.0
    %692 = vmatpush1.msra.mxu0 0.0
    %693 = vmatprep.subr.mxu0 0.0
    %694 = vmatpush1.msra.mxu0 0.0
    %695 = vmatprep.subr.mxu0 0.0
    %696 = vmatpush1.msra.mxu0 0.0
    %697 = vmatprep.subr.mxu0 0.0
    %698 = vmatpush1.msra.mxu0 0.0
    %699 = vmatprep.subr.mxu0 0.0
    %700 = vmatpush1.msra.mxu0 0.0
    %701 = vmatprep.subr.mxu0 0.0
    %702 = vmatpush1.msra.mxu0 0.0
    %703 = vmatprep.subr.mxu0 0.0
    %704 = vmatpush1.msra.mxu0 0.0
    %705 = vmatprep.subr.mxu0 0.0
    %706 = vmatpush1.msra.mxu0 0.0
    %707 = vmatprep.subr.mxu0 0.0
    %708 = vmatpush1.msra.mxu0 0.0
    %709 = vmatprep.subr.mxu0 0.0
    %710 = vmatpush1.msra.mxu0 0.0
    %711 = vmatprep.subr.mxu0 0.0
    %712 = vmatpush1.msra.mxu0 0.0
    %713 = vmatprep.subr.mxu0 0.0
    %714 = vmatpush1.msra.mxu0 0.0
    %715 = vmatprep.subr.mxu0 0.0
    %716 = vmatpush1.msra.mxu0 0.0
    %717 = vmatprep.subr.mxu0 0.0
    %718 = vmatpush1.msra.mxu0 0.0
    %719 = vmatprep.subr.mxu0 0.0
    %720 = vmatpush1.msra.mxu0 0.0
    %721 = vmatprep.subr.mxu0 0.0
    %722 = vmatpush1.msra.mxu0 0.0
    %723 = vmatprep.subr.mxu0 0.0
    %724 = vmatpush1.msra.mxu0 0.0
    %725 = vmatprep.subr.mxu0 0.0
    %726 = vmatpush1.msra.mxu0 0.0
    %727 = vmatprep.subr.mxu0 0.0
    %728 = vmatpush1.msra.mxu0 0.0
    %729 = vmatprep.subr.mxu0 0.0
    %730 = vmatpush1.msra.mxu0 0.0
    %731 = vmatprep.subr.mxu0 0.0
    %732 = vmatpush1.msra.mxu0 0.0
    %733 = vmatprep.subr.mxu0 0.0
    %734 = vmatpush1.msra.mxu0 0.0
    %735 = vmatprep.subr.mxu0 0.0
    %736 = vmatpush1.msra.mxu0 0.0
    %737 = vmatprep.subr.mxu0 0.0
    %738 = vmatpush1.msra.mxu0 0.0
    %739 = vmatprep.subr.mxu0 0.0
    %740 = vmatpush1.msra.mxu0 0.0
    %741 = vmatprep.subr.mxu0 0.0
    %742 = vmatpush1.msra.mxu0 0.0
    %743 = vmatprep.subr.mxu0 0.0
    %744 = vmatpush1.msra.mxu0 0.0
    %745 = vmatprep.subr.mxu0 0.0
    %746 = vmatpush1.msra.mxu0 0.0
    %747 = vmatprep.subr.mxu0 0.0
    %748 = vmatpush1.msra.mxu0 0.0
    %749 = vmatprep.subr.mxu0 0.0
    %750 = vmatpush1.msra.mxu0 0.0
    %751 = vmatprep.subr.mxu0 0.0
    %752 = vmatpush1.msra.mxu0 0.0
    %753 = vmatprep.mubr.f32.mxu0 0.0
    %754 = vmatmul.mubr.f32.gmra.mrb[0].mxu0 %v684
    %v755 = vpop.f32.mrb[0].mxu0
    %v756 = vadd.f32 0.0, %v755
    %v757 = vpop.f32.mrb[0].mxu0
    %758 = vdwg.mxu0
    %v759 = vadd.f32 %v659, %v756
    %v760 = vld [vmem:[#allocation2 + $0x4] sm:$0x1]
    %v761 = vld [vmem:[#allocation2 + $0xc] sm:$0x1]
    %v762 = vld [vmem:[#allocation2 + $0x14] sm:$0x1]
    %v763 = vld [vmem:[#allocation2 + $0x1c] sm:$0x1]
    %v764 = vld [vmem:[#allocation2 + $0x24] sm:$0x1]
    %v765 = vld [vmem:[#allocation2 + $0x2c] sm:$0x1]
    %s766 = scalar_lea.vmem %s2, 16
    %v767 = vld [vmem:[%s766] sm:$0xf]
    %v774 = vrot.slane %v761, 7
    %v775 = vsel %vm380, %v774, %v760
    %v776 = vrot.slane %v762, 6
    %v777 = vsel %vm383, %v776, %v775
    %v778 = vrot.slane %v763, 5
    %v779 = vsel %vm386, %v778, %v777
    %v780 = vrot.slane %v764, 4
    %v781 = vsel %vm389, %v780, %v779
    %v782 = vrot.slane %v765, 3
    %v783 = vsel %vm392, %v782, %v781
    %v784 = vsel %vm351, %v783, 0
    %v787 = vsel %vm41, %v767, 0
    %789 = vmatprep.subr.mxu0 0.0
    %790 = vmatpush1.msra.mxu0 %v787
    %791 = vmatprep.subr.mxu0 0.0
    %792 = vmatpush1.msra.mxu0 0.0
    %793 = vmatprep.subr.mxu0 0.0
    %794 = vmatpush1.msra.mxu0 0.0
    %795 = vmatprep.subr.mxu0 0.0
    %796 = vmatpush1.msra.mxu0 0.0
    %797 = vmatprep.subr.mxu0 0.0
    %798 = vmatpush1.msra.mxu0 0.0
    %799 = vmatprep.subr.mxu0 0.0
    %800 = vmatpush1.msra.mxu0 0.0
    %801 = vmatprep.subr.mxu0 0.0
    %802 = vmatpush1.msra.mxu0 0.0
    %803 = vmatprep.subr.mxu0 0.0
    %804 = vmatpush1.msra.mxu0 0.0
    %805 = vmatprep.subr.mxu0 0.0
    %806 = vmatpush1.msra.mxu0 0.0
    %807 = vmatprep.subr.mxu0 0.0
    %808 = vmatpush1.msra.mxu0 0.0
    %809 = vmatprep.subr.mxu0 0.0
    %810 = vmatpush1.msra.mxu0 0.0
    %811 = vmatprep.subr.mxu0 0.0
    %812 = vmatpush1.msra.mxu0 0.0
    %813 = vmatprep.subr.mxu0 0.0
    %814 = vmatpush1.msra.mxu0 0.0
    %815 = vmatprep.subr.mxu0 0.0
    %816 = vmatpush1.msra.mxu0 0.0
    %817 = vmatprep.subr.mxu0 0.0
    %818 = vmatpush1.msra.mxu0 0.0
    %819 = vmatprep.subr.mxu0 0.0
    %820 = vmatpush1.msra.mxu0 0.0
    %821 = vmatprep.subr.mxu0 0.0
    %822 = vmatpush1.msra.mxu0 0.0
    %823 = vmatprep.subr.mxu0 0.0
    %824 = vmatpush1.msra.mxu0 0.0
    %825 = vmatprep.subr.mxu0 0.0
    %826 = vmatpush1.msra.mxu0 0.0
    %827 = vmatprep.subr.mxu0 0.0
    %828 = vmatpush1.msra.mxu0 0.0
    %829 = vmatprep.subr.mxu0 0.0
    %830 = vmatpush1.msra.mxu0 0.0
    %831 = vmatprep.subr.mxu0 0.0
    %832 = vmatpush1.msra.mxu0 0.0
    %833 = vmatprep.subr.mxu0 0.0
    %834 = vmatpush1.msra.mxu0 0.0
    %835 = vmatprep.subr.mxu0 0.0
    %836 = vmatpush1.msra.mxu0 0.0
    %837 = vmatprep.subr.mxu0 0.0
    %838 = vmatpush1.msra.mxu0 0.0
    %839 = vmatprep.subr.mxu0 0.0
    %840 = vmatpush1.msra.mxu0 0.0
    %841 = vmatprep.subr.mxu0 0.0
    %842 = vmatpush1.msra.mxu0 0.0
    %843 = vmatprep.subr.mxu0 0.0
    %844 = vmatpush1.msra.mxu0 0.0
    %845 = vmatprep.subr.mxu0 0.0
    %846 = vmatpush1.msra.mxu0 0.0
    %847 = vmatprep.subr.mxu0 0.0
    %848 = vmatpush1.msra.mxu0 0.0
    %849 = vmatprep.subr.mxu0 0.0
    %850 = vmatpush1.msra.mxu0 0.0
    %851 = vmatprep.subr.mxu0 0.0
    %852 = vmatpush1.msra.mxu0 0.0
    %853 = vmatprep.mubr.f32.mxu0 0.0
    %854 = vmatmul.mubr.f32.gmra.mrb[0].mxu0 %v784
    %v855 = vpop.f32.mrb[0].mxu0
    %v856 = vadd.f32 0.0, %v855
    %v857 = vpop.f32.mrb[0].mxu0
    %858 = vdwg.mxu0
    %v859 = vadd.f32 %v759, %v856
    %v860 = vld [vmem:[#allocation2 + $0x5] sm:$0x1]
    %v861 = vld [vmem:[#allocation2 + $0xd] sm:$0x1]
    %v862 = vld [vmem:[#allocation2 + $0x15] sm:$0x1]
    %v863 = vld [vmem:[#allocation2 + $0x1d] sm:$0x1]
    %v864 = vld [vmem:[#allocation2 + $0x25] sm:$0x1]
    %v865 = vld [vmem:[#allocation2 + $0x2d] sm:$0x1]
    %s866 = scalar_lea.vmem %s2, 20
    %v867 = vld [vmem:[%s866] sm:$0xf]
    %v874 = vrot.slane %v861, 7
    %v875 = vsel %vm380, %v874, %v860
    %v876 = vrot.slane %v862, 6
    %v877 = vsel %vm383, %v876, %v875
    %v878 = vrot.slane %v863, 5
    %v879 = vsel %vm386, %v878, %v877
    %v880 = vrot.slane %v864, 4
    %v881 = vsel %vm389, %v880, %v879
    %v882 = vrot.slane %v865, 3
    %v883 = vsel %vm392, %v882, %v881
    %v884 = vsel %vm351, %v883, 0
    %v887 = vsel %vm41, %v867, 0
    %889 = vmatprep.subr.mxu0 0.0
    %890 = vmatpush1.msra.mxu0 %v887
    %891 = vmatprep.subr.mxu0 0.0
    %892 = vmatpush1.msra.mxu0 0.0
    %893 = vmatprep.subr.mxu0 0.0
    %894 = vmatpush1.msra.mxu0 0.0
    %895 = vmatprep.subr.mxu0 0.0
    %896 = vmatpush1.msra.mxu0 0.0
    %897 = vmatprep.subr.mxu0 0.0
    %898 = vmatpush1.msra.mxu0 0.0
    %899 = vmatprep.subr.mxu0 0.0
    %900 = vmatpush1.msra.mxu0 0.0
    %901 = vmatprep.subr.mxu0 0.0
    %902 = vmatpush1.msra.mxu0 0.0
    %903 = vmatprep.subr.mxu0 0.0
    %904 = vmatpush1.msra.mxu0 0.0
    %905 = vmatprep.subr.mxu0 0.0
    %906 = vmatpush1.msra.mxu0 0.0
    %907 = vmatprep.subr.mxu0 0.0
    %908 = vmatpush1.msra.mxu0 0.0
    %909 = vmatprep.subr.mxu0 0.0
    %910 = vmatpush1.msra.mxu0 0.0
    %911 = vmatprep.subr.mxu0 0.0
    %912 = vmatpush1.msra.mxu0 0.0
    %913 = vmatprep.subr.mxu0 0.0
    %914 = vmatpush1.msra.mxu0 0.0
    %915 = vmatprep.subr.mxu0 0.0
    %916 = vmatpush1.msra.mxu0 0.0
    %917 = vmatprep.subr.mxu0 0.0
    %918 = vmatpush1.msra.mxu0 0.0
    %919 = vmatprep.subr.mxu0 0.0
    %920 = vmatpush1.msra.mxu0 0.0
    %921 = vmatprep.subr.mxu0 0.0
    %922 = vmatpush1.msra.mxu0 0.0
    %923 = vmatprep.subr.mxu0 0.0
    %924 = vmatpush1.msra.mxu0 0.0
    %925 = vmatprep.subr.mxu0 0.0
    %926 = vmatpush1.msra.mxu0 0.0
    %927 = vmatprep.subr.mxu0 0.0
    %928 = vmatpush1.msra.mxu0 0.0
    %929 = vmatprep.subr.mxu0 0.0
    %930 = vmatpush1.msra.mxu0 0.0
    %931 = vmatprep.subr.mxu0 0.0
    %932 = vmatpush1.msra.mxu0 0.0
    %933 = vmatprep.subr.mxu0 0.0
    %934 = vmatpush1.msra.mxu0 0.0
    %935 = vmatprep.subr.mxu0 0.0
    %936 = vmatpush1.msra.mxu0 0.0
    %937 = vmatprep.subr.mxu0 0.0
    %938 = vmatpush1.msra.mxu0 0.0
    %939 = vmatprep.subr.mxu0 0.0
    %940 = vmatpush1.msra.mxu0 0.0
    %941 = vmatprep.subr.mxu0 0.0
    %942 = vmatpush1.msra.mxu0 0.0
    %943 = vmatprep.subr.mxu0 0.0
    %944 = vmatpush1.msra.mxu0 0.0
    %945 = vmatprep.subr.mxu0 0.0
    %946 = vmatpush1.msra.mxu0 0.0
    %947 = vmatprep.subr.mxu0 0.0
    %948 = vmatpush1.msra.mxu0 0.0
    %949 = vmatprep.subr.mxu0 0.0
    %950 = vmatpush1.msra.mxu0 0.0
    %951 = vmatprep.subr.mxu0 0.0
    %952 = vmatpush1.msra.mxu0 0.0
    %953 = vmatprep.mubr.f32.mxu0 0.0
    %954 = vmatmul.mubr.f32.gmra.mrb[0].mxu0 %v884
    %v955 = vpop.f32.mrb[0].mxu0
    %v956 = vadd.f32 0.0, %v955
    %v957 = vpop.f32.mrb[0].mxu0
    %958 = vdwg.mxu0
    %v959 = vadd.f32 %v859, %v956
    %v960 = vld [vmem:[#allocation2 + $0x6] sm:$0x1]
    %v961 = vld [vmem:[#allocation2 + $0xe] sm:$0x1]
    %v962 = vld [vmem:[#allocation2 + $0x16] sm:$0x1]
    %v963 = vld [vmem:[#allocation2 + $0x1e] sm:$0x1]
    %v964 = vld [vmem:[#allocation2 + $0x26] sm:$0x1]
    %v965 = vld [vmem:[#allocation2 + $0x2e] sm:$0x1]
    %s966 = scalar_lea.vmem %s2, 24
    %v967 = vld [vmem:[%s966] sm:$0xf]
    %v974 = vrot.slane %v961, 7
    %v975 = vsel %vm380, %v974, %v960
    %v976 = vrot.slane %v962, 6
    %v977 = vsel %vm383, %v976, %v975
    %v978 = vrot.slane %v963, 5
    %v979 = vsel %vm386, %v978, %v977
    %v980 = vrot.slane %v964, 4
    %v981 = vsel %vm389, %v980, %v979
    %v982 = vrot.slane %v965, 3
    %v983 = vsel %vm392, %v982, %v981
    %v984 = vsel %vm351, %v983, 0
    %v987 = vsel %vm41, %v967, 0
    %989 = vmatprep.subr.mxu0 0.0
    %990 = vmatpush1.msra.mxu0 %v987
    %991 = vmatprep.subr.mxu0 0.0
    %992 = vmatpush1.msra.mxu0 0.0
    %993 = vmatprep.subr.mxu0 0.0
    %994 = vmatpush1.msra.mxu0 0.0
    %995 = vmatprep.subr.mxu0 0.0
    %996 = vmatpush1.msra.mxu0 0.0
    %997 = vmatprep.subr.mxu0 0.0
    %998 = vmatpush1.msra.mxu0 0.0
    %999 = vmatprep.subr.mxu0 0.0
    %1000 = vmatpush1.msra.mxu0 0.0
    %1001 = vmatprep.subr.mxu0 0.0
    %1002 = vmatpush1.msra.mxu0 0.0
    %1003 = vmatprep.subr.mxu0 0.0
    %1004 = vmatpush1.msra.mxu0 0.0
    %1005 = vmatprep.subr.mxu0 0.0
    %1006 = vmatpush1.msra.mxu0 0.0
    %1007 = vmatprep.subr.mxu0 0.0
    %1008 = vmatpush1.msra.mxu0 0.0
    %1009 = vmatprep.subr.mxu0 0.0
    %1010 = vmatpush1.msra.mxu0 0.0
    %1011 = vmatprep.subr.mxu0 0.0
    %1012 = vmatpush1.msra.mxu0 0.0
    %1013 = vmatprep.subr.mxu0 0.0
    %1014 = vmatpush1.msra.mxu0 0.0
    %1015 = vmatprep.subr.mxu0 0.0
    %1016 = vmatpush1.msra.mxu0 0.0
    %1017 = vmatprep.subr.mxu0 0.0
    %1018 = vmatpush1.msra.mxu0 0.0
    %1019 = vmatprep.subr.mxu0 0.0
    %1020 = vmatpush1.msra.mxu0 0.0
    %1021 = vmatprep.subr.mxu0 0.0
    %1022 = vmatpush1.msra.mxu0 0.0
    %1023 = vmatprep.subr.mxu0 0.0
    %1024 = vmatpush1.msra.mxu0 0.0
    %1025 = vmatprep.subr.mxu0 0.0
    %1026 = vmatpush1.msra.mxu0 0.0
    %1027 = vmatprep.subr.mxu0 0.0
    %1028 = vmatpush1.msra.mxu0 0.0
    %1029 = vmatprep.subr.mxu0 0.0
    %1030 = vmatpush1.msra.mxu0 0.0
    %1031 = vmatprep.subr.mxu0 0.0
    %1032 = vmatpush1.msra.mxu0 0.0
    %1033 = vmatprep.subr.mxu0 0.0
    %1034 = vmatpush1.msra.mxu0 0.0
    %1035 = vmatprep.subr.mxu0 0.0
    %1036 = vmatpush1.msra.mxu0 0.0
    %1037 = vmatprep.subr.mxu0 0.0
    %1038 = vmatpush1.msra.mxu0 0.0
    %1039 = vmatprep.subr.mxu0 0.0
    %1040 = vmatpush1.msra.mxu0 0.0
    %1041 = vmatprep.subr.mxu0 0.0
    %1042 = vmatpush1.msra.mxu0 0.0
    %1043 = vmatprep.subr.mxu0 0.0
    %1044 = vmatpush1.msra.mxu0 0.0
    %1045 = vmatprep.subr.mxu0 0.0
    %1046 = vmatpush1.msra.mxu0 0.0
    %1047 = vmatprep.subr.mxu0 0.0
    %1048 = vmatpush1.msra.mxu0 0.0
    %1049 = vmatprep.subr.mxu0 0.0
    %1050 = vmatpush1.msra.mxu0 0.0
    %1051 = vmatprep.subr.mxu0 0.0
    %1052 = vmatpush1.msra.mxu0 0.0
    %1053 = vmatprep.mubr.f32.mxu0 0.0
    %1054 = vmatmul.mubr.f32.gmra.mrb[0].mxu0 %v984
    %v1055 = vpop.f32.mrb[0].mxu0
    %v1056 = vadd.f32 0.0, %v1055
    %v1057 = vpop.f32.mrb[0].mxu0
    %1058 = vdwg.mxu0
    %v1059 = vadd.f32 %v959, %v1056
    %v1060 = vld [vmem:[#allocation2 + $0x7] sm:$0x1]
    %v1061 = vld [vmem:[#allocation2 + $0xf] sm:$0x1]
    %v1062 = vld [vmem:[#allocation2 + $0x17] sm:$0x1]
    %v1063 = vld [vmem:[#allocation2 + $0x1f] sm:$0x1]
    %v1064 = vld [vmem:[#allocation2 + $0x27] sm:$0x1]
    %v1065 = vld [vmem:[#allocation2 + $0x2f] sm:$0x1]
    %s1066 = scalar_lea.vmem %s2, 28
    %v1067 = vld [vmem:[%s1066] sm:$0xf]
    %v1074 = vrot.slane %v1061, 7
    %v1075 = vsel %vm380, %v1074, %v1060
    %v1076 = vrot.slane %v1062, 6
    %v1077 = vsel %vm383, %v1076, %v1075
    %v1078 = vrot.slane %v1063, 5
    %v1079 = vsel %vm386, %v1078, %v1077
    %v1080 = vrot.slane %v1064, 4
    %v1081 = vsel %vm389, %v1080, %v1079
    %v1082 = vrot.slane %v1065, 3
    %v1083 = vsel %vm392, %v1082, %v1081
    %v1084 = vsel %vm351, %v1083, 0
    %v1087 = vsel %vm41, %v1067, 0
    %1089 = vmatprep.subr.mxu0 0.0
    %1090 = vmatpush1.msra.mxu0 %v1087
    %1091 = vmatprep.subr.mxu0 0.0
    %1092 = vmatpush1.msra.mxu0 0.0
    %1093 = vmatprep.subr.mxu0 0.0
    %1094 = vmatpush1.msra.mxu0 0.0
    %1095 = vmatprep.subr.mxu0 0.0
    %1096 = vmatpush1.msra.mxu0 0.0
    %1097 = vmatprep.subr.mxu0 0.0
    %1098 = vmatpush1.msra.mxu0 0.0
    %1099 = vmatprep.subr.mxu0 0.0
    %1100 = vmatpush1.msra.mxu0 0.0
    %1101 = vmatprep.subr.mxu0 0.0
    %1102 = vmatpush1.msra.mxu0 0.0
    %1103 = vmatprep.subr.mxu0 0.0
    %1104 = vmatpush1.msra.mxu0 0.0
    %1105 = vmatprep.subr.mxu0 0.0
    %1106 = vmatpush1.msra.mxu0 0.0
    %1107 = vmatprep.subr.mxu0 0.0
    %1108 = vmatpush1.msra.mxu0 0.0
    %1109 = vmatprep.subr.mxu0 0.0
    %1110 = vmatpush1.msra.mxu0 0.0
    %1111 = vmatprep.subr.mxu0 0.0
    %1112 = vmatpush1.msra.mxu0 0.0
    %1113 = vmatprep.subr.mxu0 0.0
    %1114 = vmatpush1.msra.mxu0 0.0
    %1115 = vmatprep.subr.mxu0 0.0
    %1116 = vmatpush1.msra.mxu0 0.0
    %1117 = vmatprep.subr.mxu0 0.0
    %1118 = vmatpush1.msra.mxu0 0.0
    %1119 = vmatprep.subr.mxu0 0.0
    %1120 = vmatpush1.msra.mxu0 0.0
    %1121 = vmatprep.subr.mxu0 0.0
    %1122 = vmatpush1.msra.mxu0 0.0
    %1123 = vmatprep.subr.mxu0 0.0
    %1124 = vmatpush1.msra.mxu0 0.0
    %1125 = vmatprep.subr.mxu0 0.0
    %1126 = vmatpush1.msra.mxu0 0.0
    %1127 = vmatprep.subr.mxu0 0.0
    %1128 = vmatpush1.msra.mxu0 0.0
    %1129 = vmatprep.subr.mxu0 0.0
    %1130 = vmatpush1.msra.mxu0 0.0
    %1131 = vmatprep.subr.mxu0 0.0
    %1132 = vmatpush1.msra.mxu0 0.0
    %1133 = vmatprep.subr.mxu0 0.0
    %1134 = vmatpush1.msra.mxu0 0.0
    %1135 = vmatprep.subr.mxu0 0.0
    %1136 = vmatpush1.msra.mxu0 0.0
    %1137 = vmatprep.subr.mxu0 0.0
    %1138 = vmatpush1.msra.mxu0 0.0
    %1139 = vmatprep.subr.mxu0 0.0
    %1140 = vmatpush1.msra.mxu0 0.0
    %1141 = vmatprep.subr.mxu0 0.0
    %1142 = vmatpush1.msra.mxu0 0.0
    %1143 = vmatprep.subr.mxu0 0.0
    %1144 = vmatpush1.msra.mxu0 0.0
    %1145 = vmatprep.subr.mxu0 0.0
    %1146 = vmatpush1.msra.mxu0 0.0
    %1147 = vmatprep.subr.mxu0 0.0
    %1148 = vmatpush1.msra.mxu0 0.0
    %1149 = vmatprep.subr.mxu0 0.0
    %1150 = vmatpush1.msra.mxu0 0.0
    %1151 = vmatprep.subr.mxu0 0.0
    %1152 = vmatpush1.msra.mxu0 0.0
    %1153 = vmatprep.mubr.f32.mxu0 0.0
    %1154 = vmatmul.mubr.f32.gmra.mrb[0].mxu0 %v1084
    %v1155 = vpop.f32.mrb[0].mxu0
    %v1156 = vadd.f32 0.0, %v1155
    %v1157 = vpop.f32.mrb[0].mxu0
    %1158 = vdwg.mxu0
    %v1159 = vadd.f32 %v1059, %v1156
    %v1160 = vld [vmem:[%s3] sm:$0x1]
    %v1162 = vlaneseq
    %v1163 = vshrl.u32 %v1162, 7
    %v1164 = vsub.s32 0, %v1163
    %v1165 = vrot.slane %v1160, %v1164
    %v1167 = vadd.f32 %v1159, %v1165
    %1168 = vst [vmem:[#allocation3] sm:$0x3f] %v1167
    // Predicated region
    $region18: #{tpu_custom_call.1} parent=1 // pred_check
      _
    $region19: #{tpu_custom_call.1} parent=1 // pred_check_branch
      %1170 = sbr.rel (0) target = $region21
    $region20: #{tpu_custom_call.1} parent=1 // pred_region
      %s1172 = ssub.s32 128, 128
      %1173 = vsyncadd [#allocation4], %s1172
      %s1175 = sshll.u32 [#allocation3], 4
      %s1176 = int_to_ptr.vmem [resolvable:$true] %s1175
      %1178 = dma.vmem_to_hbm [thread:$0]  %s1176, 128, %s4, [#allocation4]
    $region21: #{tpu_custom_call.1} parent=1 // pred_fallthru
      _
    // Predicated region
    $region22: #{tpu_custom_call.1} parent=1 // pred_check
      _
    $region23: #{tpu_custom_call.1} parent=1 // pred_check_branch
      %1180 = sbr.rel (0) target = $region25
    $region24: #{tpu_custom_call.1} parent=1 // pred_region
      %1181 = dma.done [#allocation4], 128
    $region25: #{tpu_custom_call.1} parent=1 // pred_fallthru
      _
    %1182 = vsyncpa [#allocation4], 1

</llo_original>
